<compile_context>
chip_gen: v5e
topology: v5e:2x2
jax: 0.10.0
libtpu: 0.0.40
codegen_flags: <defaults>
</compile_context>

<pallas_src>
import jax
import jax.numpy as jnp
from jax.experimental import pallas as pl
from jax.experimental.pallas import tpu as pltpu

HIDDEN = 256
SUBLANE = 8


def _round_up(x, m):
    return (x + m - 1) // m * m


def _cdiv(a, b):
    return (a + b - 1) // b


# ---------------------------------------------------------------------------
# Kernel
# ---------------------------------------------------------------------------
def actor_kernel(x_ref, w1_ref, w2_ref, w3_ref, b12_ref, head_ref, out_ref):
    # One grid point = one batch tile; all three layers + activations fused.
    x = x_ref[...]                                              # f32 (TB, S)

    # fc1 in f32 (state_dim is tiny -> negligible MXU work, full precision).
    h1 = jnp.dot(x, w1_ref[...], preferred_element_type=jnp.float32)
    h1 = jnp.maximum(h1 + b12_ref[0:1, :], 0.0)

    # fc2 / fc3 on the bf16 MXU path, f32 accumulation.
    h2 = jnp.dot(h1.astype(jnp.bfloat16), w2_ref[...],
                 preferred_element_type=jnp.float32)
    h2 = jnp.maximum(h2 + b12_ref[1:2, :], 0.0)

    a = jnp.dot(h2.astype(jnp.bfloat16), w3_ref[...],
                preferred_element_type=jnp.float32)
    # head rows: 0 = b3, 1 = action_scale, 2 = action_bias
    a = jnp.tanh(a + head_ref[0:1, :]) * head_ref[1:2, :] + head_ref[2:3, :]
    out_ref[...] = a.astype(out_ref.dtype)


# ---------------------------------------------------------------------------
# Parameter handling
# ---------------------------------------------------------------------------
def init_actor_params(key, state_dim, action_dim, action_low, action_high):
    """PyTorch-Linear-style init. Weights stored transposed as (in, out)."""
    k1, k2, k3, k4, k5, k6 = jax.random.split(key, 6)

    def uinit(k, shape, fan_in):
        bound = 1.0 / jnp.sqrt(fan_in)
        return jax.random.uniform(k, shape, jnp.float32, -bound, bound)

    w1 = uinit(k1, (state_dim, HIDDEN), state_dim)
    b1 = uinit(k2, (1, HIDDEN), state_dim)
    w2 = uinit(k3, (HIDDEN, HIDDEN), HIDDEN)
    b2 = uinit(k4, (1, HIDDEN), HIDDEN)
    w3 = uinit(k5, (HIDDEN, action_dim), HIDDEN)
    b3 = uinit(k6, (1, action_dim), HIDDEN)

    action_low = jnp.asarray(action_low, jnp.float32).reshape(1, action_dim)
    action_high = jnp.asarray(action_high, jnp.float32).reshape(1, action_dim)
    scale = (action_high - action_low) / 2.0
    shift = (action_high + action_low) / 2.0
    return (w1, b1, w2, b2, w3, b3, scale, shift)


def prepare_actor_params(params):
    """One-time, cacheable kernel-ready pytree (do NOT call per forward)."""
    w1, b1, w2, b2, w3, b3, scale, shift = params
    A = w3.shape[1]
    w1_k = jnp.asarray(w1, jnp.float32)              # fc1 stays f32
    w2_k = jnp.asarray(w2, jnp.bfloat16)             # fc2/fc3 bf16 MXU operands
    w3_k = jnp.asarray(w3, jnp.bfloat16)
    b12 = jnp.concatenate(
        [jnp.reshape(b1, (1, HIDDEN)), jnp.reshape(b2, (1, HIDDEN))],
        axis=0).astype(jnp.float32)                  # (2, 256)
    head = jnp.concatenate(
        [jnp.reshape(b3, (1, A)), jnp.reshape(scale, (1, A)),
         jnp.reshape(shift, (1, A))], axis=0).astype(jnp.float32)  # (3, A)
    return (w1_k, w2_k, w3_k, b12, head)


# ---------------------------------------------------------------------------
# Forward wrapper
# ---------------------------------------------------------------------------
def actor_forward(x, prepared, *, max_tile_b=2048):
    """Pallas-backed Actor.forward(x). `prepared` = prepare_actor_params(...)."""
    w1, w2, w3, b12, head = prepared
    B, S = x.shape
    A = w3.shape[1]

    # Batch tiling: large tiles to amortize per-step overhead; for B >= 64
    # guarantee >= 2 tiles so v7x's second TensorCore has work (one extra
    # ~0.35 us grid step is negligible on single-TC v5e/v6e).
    tile_b = min(max_tile_b, _round_up(B, SUBLANE))
    if B >= 64:
        tile_b = min(tile_b, _round_up(_cdiv(B, 2), SUBLANE))
    num_tiles = _cdiv(B, tile_b)

    const = lambda shape: pl.BlockSpec(shape, lambda i: (0, 0))

    out = pl.pallas_call(
        actor_kernel,
        out_shape=jax.ShapeDtypeStruct((B, A), jnp.float32),
        grid=(num_tiles,),
        in_specs=[
            pl.BlockSpec((tile_b, S), lambda i: (i, 0)),   # x batch tile (f32)
            const((S, HIDDEN)),                            # W1 (f32, resident)
            const((HIDDEN, HIDDEN)),                       # W2 (bf16, resident)
            const((HIDDEN, A)),                            # W3 (bf16, resident)
            const((2, HIDDEN)),                            # [b1; b2]
            const((3, A)),                                 # [b3; scale; bias]
        ],
        out_specs=pl.BlockSpec((tile_b, A), lambda i: (i, 0)),
        compiler_params=pltpu.CompilerParams(
            dimension_semantics=("parallel",)),            # shard tiles over TCs
    )(x.astype(jnp.float32), w1, w2, w3, b12, head)

    return out


# ---------------------------------------------------------------------------
# Pure-JAX references
# ---------------------------------------------------------------------------
def actor_forward_ref(x, params, *, match_kernel_dtypes=True):
    """match_kernel_dtypes=True mirrors the kernel (f32 fc1, bf16 fc2/fc3)."""
    w1, b1, w2, b2, w3, b3, scale, shift = params
    if match_kernel_dtypes:
        cast = lambda a: a.astype(jnp.bfloat16)
    else:
        cast = lambda a: a
    h1 = jnp.maximum(
        jnp.dot(x, w1, preferred_element_type=jnp.float32) + b1, 0.0)
    h2 = jnp.maximum(
        jnp.dot(cast(h1), cast(w2), preferred_element_type=jnp.float32) + b2, 0.0)
    a = jnp.dot(cast(h2), cast(w3), preferred_element_type=jnp.float32) + b3
    return jnp.tanh(a) * scale + shift


# ---------------------------------------------------------------------------
# Test
# ---------------------------------------------------------------------------
if __name__ == "__main__":
    batch, state_dim, action_dim = 8, 17, 6

    key = jax.random.PRNGKey(0)
    kp, kx = jax.random.split(key)

    action_low = -1.5 * jnp.ones((action_dim,), jnp.float32)
    action_high = 2.0 * jnp.ones((action_dim,), jnp.float32)

    params = init_actor_params(kp, state_dim, action_dim, action_low, action_high)
    prepared = prepare_actor_params(params)          # one-time, cached
    x = jax.random.normal(kx, (batch, state_dim), jnp.float32)

    out = actor_forward(x, prepared)
    out = jax.block_until_ready(out)
    assert out.shape == (batch, action_dim), out.shape

    # vs. dtype-matched reference (f32 fc1, bf16 fc2/fc3)
    out_ref = actor_forward_ref(x, params, match_kernel_dtypes=True)
    assert jnp.allclose(out, out_ref, atol=1e-2, rtol=1e-2), (out, out_ref)
    # vs. the true full-f32 PyTorch Actor semantics (bf16 MXU path error budget)
    out_ref_f32 = actor_forward_ref(x, params, match_kernel_dtypes=False)
    assert jnp.allclose(out, out_ref_f32, atol=3e-2, rtol=3e-2), (out, out_ref_f32)

    print("KERNEL_OK")
</pallas_src>

<mosaic_0001>
module attributes {stable_mosaic.version = 11 : i64} {
  func.func @actor_kernel(%arg0: i32, %arg1: memref<8x17xf32, #tpu.memory_space<vmem>>, %arg2: memref<17x256xf32, #tpu.memory_space<vmem>>, %arg3: memref<256x256xbf16, #tpu.memory_space<vmem>>, %arg4: memref<256x6xbf16, #tpu.memory_space<vmem>>, %arg5: memref<2x256xf32, #tpu.memory_space<vmem>>, %arg6: memref<3x6xf32, #tpu.memory_space<vmem>>, %arg7: memref<8x6xf32, #tpu.memory_space<vmem>>) attributes {dimension_semantics = [#tpu.dimension_semantics<parallel>], iteration_bounds = array<i64: 1>, scalar_prefetch = 0 : i64, scratch_operands = 0 : i64, tpu.core_type = #tpu.core_type<tc>, window_params = [{transform_indices = @transform_0, window_bounds = array<i64: 8, 17>}, {pipeline_mode = #tpu.pipeline_mode<synchronous>, transform_indices = @transform_1, window_bounds = array<i64: 17, 256>}, {pipeline_mode = #tpu.pipeline_mode<synchronous>, transform_indices = @transform_2, window_bounds = array<i64: 256, 256>}, {pipeline_mode = #tpu.pipeline_mode<synchronous>, transform_indices = @transform_3, window_bounds = array<i64: 256, 6>}, {pipeline_mode = #tpu.pipeline_mode<synchronous>, transform_indices = @transform_4, window_bounds = array<i64: 2, 256>}, {pipeline_mode = #tpu.pipeline_mode<synchronous>, transform_indices = @transform_5, window_bounds = array<i64: 3, 6>}, {transform_indices = @transform_6, window_bounds = array<i64: 8, 6>}]} {
    %c0 = arith.constant 0 : index
    %c0_0 = arith.constant 0 : index
    %0 = vector.load %arg1[%c0, %c0_0] : memref<8x17xf32, #tpu.memory_space<vmem>>, vector<8x17xf32>
    %c0_1 = arith.constant 0 : index
    %c0_2 = arith.constant 0 : index
    %1 = vector.load %arg2[%c0_1, %c0_2] : memref<17x256xf32, #tpu.memory_space<vmem>>, vector<17x256xf32>
    %cst = arith.constant dense<0.000000e+00> : vector<8x256xf32>
    %2 = tpu.matmul %0, %1, %cst {dimension_numbers = #tpu.dot_dimension_numbers<[1], [0], [0], [1], [0, 0, 1, 1], [], []>} : vector<8x17xf32>, vector<17x256xf32>, vector<8x256xf32> -> vector<8x256xf32>
    %c0_3 = arith.constant 0 : index
    %c0_4 = arith.constant 0 : index
    %3 = vector.load %arg5[%c0_3, %c0_4] : memref<2x256xf32, #tpu.memory_space<vmem>>, vector<1x256xf32>
    %4 = vector.broadcast %3 : vector<1x256xf32> to vector<8x256xf32>
    %5 = arith.addf %2, %4 : vector<8x256xf32>
    %cst_5 = arith.constant 0.000000e+00 : f32
    %6 = vector.broadcast %cst_5 : f32 to vector<8x256xf32>
    %7 = arith.maximumf %5, %6 : vector<8x256xf32>
    %8 = arith.truncf %7 : vector<8x256xf32> to vector<8x256xbf16>
    %c0_6 = arith.constant 0 : index
    %c0_7 = arith.constant 0 : index
    %9 = vector.load %arg3[%c0_6, %c0_7] : memref<256x256xbf16, #tpu.memory_space<vmem>>, vector<256x256xbf16>
    %cst_8 = arith.constant dense<0.000000e+00> : vector<8x256xf32>
    %10 = tpu.matmul %8, %9, %cst_8 {dimension_numbers = #tpu.dot_dimension_numbers<[1], [0], [0], [1], [0, 0, 1, 1], [], []>} : vector<8x256xbf16>, vector<256x256xbf16>, vector<8x256xf32> -> vector<8x256xf32>
    %c1 = arith.constant 1 : index
    %c0_9 = arith.constant 0 : index
    %11 = vector.load %arg5[%c1, %c0_9] : memref<2x256xf32, #tpu.memory_space<vmem>>, vector<1x256xf32>
    %12 = vector.broadcast %11 : vector<1x256xf32> to vector<8x256xf32>
    %13 = arith.addf %10, %12 : vector<8x256xf32>
    %cst_10 = arith.constant 0.000000e+00 : f32
    %14 = vector.broadcast %cst_10 : f32 to vector<8x256xf32>
    %15 = arith.maximumf %13, %14 : vector<8x256xf32>
    %16 = arith.truncf %15 : vector<8x256xf32> to vector<8x256xbf16>
    %c0_11 = arith.constant 0 : index
    %c0_12 = arith.constant 0 : index
    %17 = vector.load %arg4[%c0_11, %c0_12] : memref<256x6xbf16, #tpu.memory_space<vmem>>, vector<256x6xbf16>
    %cst_13 = arith.constant dense<0.000000e+00> : vector<8x6xf32>
    %18 = tpu.matmul %16, %17, %cst_13 {dimension_numbers = #tpu.dot_dimension_numbers<[1], [0], [0], [1], [0, 0, 1, 1], [], []>} : vector<8x256xbf16>, vector<256x6xbf16>, vector<8x6xf32> -> vector<8x6xf32>
    %c0_14 = arith.constant 0 : index
    %c0_15 = arith.constant 0 : index
    %19 = vector.load %arg6[%c0_14, %c0_15] : memref<3x6xf32, #tpu.memory_space<vmem>>, vector<1x6xf32>
    %20 = vector.broadcast %19 : vector<1x6xf32> to vector<8x6xf32>
    %21 = arith.addf %18, %20 : vector<8x6xf32>
    %22 = math.tanh %21 : vector<8x6xf32>
    %c1_16 = arith.constant 1 : index
    %c0_17 = arith.constant 0 : index
    %23 = vector.load %arg6[%c1_16, %c0_17] : memref<3x6xf32, #tpu.memory_space<vmem>>, vector<1x6xf32>
    %24 = vector.broadcast %23 : vector<1x6xf32> to vector<8x6xf32>
    %25 = arith.mulf %22, %24 : vector<8x6xf32>
    %c2 = arith.constant 2 : index
    %c0_18 = arith.constant 0 : index
    %26 = vector.load %arg6[%c2, %c0_18] : memref<3x6xf32, #tpu.memory_space<vmem>>, vector<1x6xf32>
    %27 = vector.broadcast %26 : vector<1x6xf32> to vector<8x6xf32>
    %28 = arith.addf %25, %27 : vector<8x6xf32>
    %c0_19 = arith.constant 0 : index
    %c0_20 = arith.constant 0 : index
    %29 = vector.load %arg7[%c0_19, %c0_20] : memref<8x6xf32, #tpu.memory_space<vmem>>, vector<8x6xf32>
    tpu.vector_store %arg7[%c0_19, %c0_20], %28 {strides = array<i32>} : memref<8x6xf32, #tpu.memory_space<vmem>>, vector<8x6xf32>,
    return
  }
  func.func @transform_0(%arg0: i32) -> (i32, i32) {
    %c0_i32 = arith.constant 0 : i32
    %c0_i32_0 = arith.constant 0 : i32
    return %arg0, %c0_i32 : i32, i32
  }
  func.func @transform_1(%arg0: i32) -> (i32, i32) {
    %c0_i32 = arith.constant 0 : i32
    %c0_i32_0 = arith.constant 0 : i32
    %c0_i32_1 = arith.constant 0 : i32
    return %c0_i32, %c0_i32_0 : i32, i32
  }
  func.func @transform_2(%arg0: i32) -> (i32, i32) {
    %c0_i32 = arith.constant 0 : i32
    %c0_i32_0 = arith.constant 0 : i32
    %c0_i32_1 = arith.constant 0 : i32
    return %c0_i32, %c0_i32_0 : i32, i32
  }
  func.func @transform_3(%arg0: i32) -> (i32, i32) {
    %c0_i32 = arith.constant 0 : i32
    %c0_i32_0 = arith.constant 0 : i32
    %c0_i32_1 = arith.constant 0 : i32
    return %c0_i32, %c0_i32_0 : i32, i32
  }
  func.func @transform_4(%arg0: i32) -> (i32, i32) {
    %c0_i32 = arith.constant 0 : i32
    %c0_i32_0 = arith.constant 0 : i32
    %c0_i32_1 = arith.constant 0 : i32
    return %c0_i32, %c0_i32_0 : i32, i32
  }
  func.func @transform_5(%arg0: i32) -> (i32, i32) {
    %c0_i32 = arith.constant 0 : i32
    %c0_i32_0 = arith.constant 0 : i32
    %c0_i32_1 = arith.constant 0 : i32
    return %c0_i32, %c0_i32_0 : i32, i32
  }
  func.func @transform_6(%arg0: i32) -> (i32, i32) {
    %c0_i32 = arith.constant 0 : i32
    %c0_i32_0 = arith.constant 0 : i32
    return %arg0, %c0_i32 : i32, i32
  }
}

</mosaic_0001>

<llo_original>
// kernel: tpu_custom_call.1
$region0: #{tpu_custom_call.1}
  #allocation0 [shape = 'u32[]', space=smem, size = 0x4, offset = 0x4, fixed_abs, tag = 'smem constant byte address 0x4 - core index']
  #allocation1 [shape = 'u32[72,128]{1,0:T(1,128)}', space=vmem, size = 0x9000, scoped, tag = 'internal scratch']
  %s0 = inlined_call_operand.vmem [shape: f32[8,17], index: 0, kind: input, shape index: {}]
  %s1 = inlined_call_operand.vmem [shape: f32[17,256], index: 1, kind: input, shape index: {}]
  %s2 = inlined_call_operand.hbm [shape: bf16[256,256], index: 2, kind: input, shape index: {}]
  %s3 = inlined_call_operand.vmem [shape: bf16[256,6], index: 3, kind: input, shape index: {}]
  %s4 = inlined_call_operand.vmem [shape: f32[2,256], index: 4, kind: input, shape index: {}]
  %s5 = inlined_call_operand.vmem [shape: f32[3,6], index: 5, kind: input, shape index: {}]
  %s6 = inlined_call_operand.hbm [shape: f32[8,6], index: 6, kind: output, shape index: {}]
  %s7 = sld [smem:[#allocation0]]
  $region38: #{tpu_custom_call.1} parent=0
    _
  %s9 = ssub.s32 1, %s7
  %s10 = scalar_select 0, %s9, %s7
  $region1: #{tpu_custom_call.1} parent=0
    #allocation2 [shape = 'u8[131072]{0}', space=vmem, size = 0x20000, scoped, tag = 'input window, operand 2, single buffered']
    #allocation3 [shape = 's32[1]{0}', space=sflag, size = 0x4, scoped, tag = 'scoped memory for tpu_custom_call.1']
    #allocation4 [shape = 's32[1]{0}', space=sflag, size = 0x4, scoped, tag = 'scoped memory for tpu_custom_call.1']
    #allocation5 [shape = 'u8[4096]{0}', space=vmem, size = 0x1000, scoped, tag = 'output window, operand 0, single buffered']
    %11 = vsyncpa [#allocation3], 0
    %12 = vsyncpa [#allocation4], 0
    // Predicated region
    $region2: #{tpu_custom_call.1} parent=1 // pred_check
      _
    $region3: #{tpu_custom_call.1} parent=1 // pred_check_branch
      %14 = sbr.rel (0) target = $region5
    $region4: #{tpu_custom_call.1} parent=1 // pred_region
      _
    $region5: #{tpu_custom_call.1} parent=1 // pred_fallthru
      _
    // Predicated region
    $region6: #{tpu_custom_call.1} parent=1 // pred_check
      _
    $region7: #{tpu_custom_call.1} parent=1 // pred_check_branch
      %16 = sbr.rel (0) target = $region9
    $region8: #{tpu_custom_call.1} parent=1 // pred_region
      _
    $region9: #{tpu_custom_call.1} parent=1 // pred_fallthru
      _
    // Predicated region
    $region10: #{tpu_custom_call.1} parent=1 // pred_check
      _
    $region11: #{tpu_custom_call.1} parent=1 // pred_check_branch
      %18 = sbr.rel (0) target = $region13
    $region12: #{tpu_custom_call.1} parent=1 // pred_region
      %20 = vsyncadd [#allocation3], 0
      %s21 = sshll.u32 %s2, 4
      %s22 = int_to_ptr.hbm [resolvable:$true] %s21
      %s23 = sshll.u32 [#allocation2], 4
      %s24 = int_to_ptr.vmem [resolvable:$true] %s23
      %29 = dma.hbm_to_vmem [thread:$0]  %s22, 4096, %s24, [#allocation3], 128, 128, 8
    $region13: #{tpu_custom_call.1} parent=1 // pred_fallthru
      _
    // Predicated region
    $region14: #{tpu_custom_call.1} parent=1 // pred_check
      _
    $region15: #{tpu_custom_call.1} parent=1 // pred_check_branch
      %31 = sbr.rel (0) target = $region17
    $region16: #{tpu_custom_call.1} parent=1 // pred_region
      _
    $region17: #{tpu_custom_call.1} parent=1 // pred_fallthru
      _
    // Predicated region
    $region18: #{tpu_custom_call.1} parent=1 // pred_check
      _
    $region19: #{tpu_custom_call.1} parent=1 // pred_check_branch
      %33 = sbr.rel (0) target = $region21
    $region20: #{tpu_custom_call.1} parent=1 // pred_region
      _
    $region21: #{tpu_custom_call.1} parent=1 // pred_fallthru
      _
    // Predicated region
    $region22: #{tpu_custom_call.1} parent=1 // pred_check
      _
    $region23: #{tpu_custom_call.1} parent=1 // pred_check_branch
      %35 = sbr.rel (0) target = $region25
    $region24: #{tpu_custom_call.1} parent=1 // pred_region
      _
    $region25: #{tpu_custom_call.1} parent=1 // pred_fallthru
      _
    // Predicated region
    $region26: #{tpu_custom_call.1} parent=1 // pred_check
      _
    $region27: #{tpu_custom_call.1} parent=1 // pred_check_branch
      %37 = sbr.rel (0) target = $region29
    $region28: #{tpu_custom_call.1} parent=1 // pred_region
      %39 = dma.done [#allocation3], 4096
    $region29: #{tpu_custom_call.1} parent=1 // pred_fallthru
      _
    %v40 = vld [vmem:[%s0] sm:$0xff]
    %v41 = vld [vmem:[%s1] sm:$0xff]
    %v42 = vld [vmem:[%s1 + $0x8] sm:$0xff]
    %v43 = vld [vmem:[%s1 + $0x10] sm:$0xff]
    %v44 = vld [vmem:[%s1 + $0x18] sm:$0xff]
    %v45 = vld [vmem:[%s1 + $0x20] sm:$0x1]
    %v46 = vld [vmem:[%s1 + $0x28] sm:$0x1]
    %v47 = vld [vmem:[%s4] ss:$2 sm:$0x3]
    %v49 = vperm.slane %v47, 0
    %v50 = vperm.slane %v47, 1
    %vm53 = vcmask 138240
    %v55 = vsel %vm53, %v40, 0
    %vm57 = vcmask 1040384
    %v59 = vsel %vm57, %v45, 0
    %v62 = vsel %vm57, %v46, 0
    %64 = vmatpush.msra.mxu0 0.0
    %65 = vmatpush.msra.mxu0 0.0
    %66 = vmatpush.msra.mxu0 0.0
    %67 = vmatpush.msra.mxu0 0.0
    %68 = vmatpush.msra.mxu0 0.0
    %69 = vmatpush.msra.mxu0 0.0
    %70 = vmatpush.msra.mxu0 0.0
    %71 = vmatpush.msra.mxu0 0.0
    %72 = vmatpush.msra.mxu0 0.0
    %73 = vmatpush.msra.mxu0 0.0
    %74 = vmatpush.msra.mxu0 0.0
    %75 = vmatpush.msra.mxu0 0.0
    %76 = vmatpush.msra.mxu0 0.0
    %77 = vmatpush.msra.mxu0 %v59
    %78 = vmatpush.msra.mxu0 %v43
    %79 = vmatpush.msra.mxu0 %v41
    %80 = vmatmul.f32.gmra.mxu0 %v55
    %v81 = vpop.f32.mrf.mxu0
    %v82 = vadd.f32 %v49, %v81
    %83 = vdwg.mxu0
    %84 = vmatpush.msra.mxu0 0.0
    %85 = vmatpush.msra.mxu0 0.0
    %86 = vmatpush.msra.mxu0 0.0
    %87 = vmatpush.msra.mxu0 0.0
    %88 = vmatpush.msra.mxu0 0.0
    %89 = vmatpush.msra.mxu0 0.0
    %90 = vmatpush.msra.mxu0 0.0
    %91 = vmatpush.msra.mxu0 0.0
    %92 = vmatpush.msra.mxu0 0.0
    %93 = vmatpush.msra.mxu0 0.0
    %94 = vmatpush.msra.mxu0 0.0
    %95 = vmatpush.msra.mxu0 0.0
    %96 = vmatpush.msra.mxu0 0.0
    %97 = vmatpush.msra.mxu0 %v62
    %98 = vmatpush.msra.mxu0 %v44
    %99 = vmatpush.msra.mxu0 %v42
    %100 = vmatmul.f32.gmra.mxu0 %v55
    %v101 = vpop.f32.mrf.mxu0
    %v102 = vadd.f32 %v50, %v101
    %103 = vdwg.mxu0
    %v104 = vmax.f32 %v82, 0.0
    %v105 = vmax.f32 %v102, 0.0
    %v106 = vpack.c.bf16 %v104, %v104
    %v107 = vpack.c.bf16 %v105, %v105
    %v108 = vld [vmem:[#allocation2] sm:$0xff]
    %v109 = vld [vmem:[#allocation2 + $0x8] sm:$0xff]
    %v110 = vld [vmem:[#allocation2 + $0x10] sm:$0xff]
    %v111 = vld [vmem:[#allocation2 + $0x18] sm:$0xff]
    %v112 = vld [vmem:[#allocation2 + $0x20] sm:$0xff]
    %v113 = vld [vmem:[#allocation2 + $0x28] sm:$0xff]
    %v114 = vld [vmem:[#allocation2 + $0x30] sm:$0xff]
    %v115 = vld [vmem:[#allocation2 + $0x38] sm:$0xff]
    %v116 = vld [vmem:[#allocation2 + $0x40] sm:$0xff]
    %v117 = vld [vmem:[#allocation2 + $0x48] sm:$0xff]
    %v118 = vld [vmem:[#allocation2 + $0x50] sm:$0xff]
    %v119 = vld [vmem:[#allocation2 + $0x58] sm:$0xff]
    %v120 = vld [vmem:[#allocation2 + $0x60] sm:$0xff]
    %v121 = vld [vmem:[#allocation2 + $0x68] sm:$0xff]
    %v122 = vld [vmem:[#allocation2 + $0x70] sm:$0xff]
    %v123 = vld [vmem:[#allocation2 + $0x78] sm:$0xff]
    %v124 = vld [vmem:[#allocation2 + $0x80] sm:$0xff]
    %v125 = vld [vmem:[#allocation2 + $0x88] sm:$0xff]
    %v126 = vld [vmem:[#allocation2 + $0x90] sm:$0xff]
    %v127 = vld [vmem:[#allocation2 + $0x98] sm:$0xff]
    %v128 = vld [vmem:[#allocation2 + $0xa0] sm:$0xff]
    %v129 = vld [vmem:[#allocation2 + $0xa8] sm:$0xff]
    %v130 = vld [vmem:[#allocation2 + $0xb0] sm:$0xff]
    %v131 = vld [vmem:[#allocation2 + $0xb8] sm:$0xff]
    %v132 = vld [vmem:[#allocation2 + $0xc0] sm:$0xff]
    %v133 = vld [vmem:[#allocation2 + $0xc8] sm:$0xff]
    %v134 = vld [vmem:[#allocation2 + $0xd0] sm:$0xff]
    %v135 = vld [vmem:[#allocation2 + $0xd8] sm:$0xff]
    %v136 = vld [vmem:[#allocation2 + $0xe0] sm:$0xff]
    %v137 = vld [vmem:[#allocation2 + $0xe8] sm:$0xff]
    %v138 = vld [vmem:[#allocation2 + $0xf0] sm:$0xff]
    %v139 = vld [vmem:[#allocation2 + $0xf8] sm:$0xff]
    %s140 = scalar_lea.vmem %s4, 1
    %v141 = vld [vmem:[%s140] ss:$2 sm:$0x3]
    %v143 = vperm.slane %v141, 0
    %v144 = vperm.slane %v141, 1
    %v179 = vunpack.c.l.b16 %v108
    %v180 = vunpack.c.h.b16 %v108
    %v181 = vunpack.c.l.b16 %v109
    %v182 = vunpack.c.h.b16 %v109
    %v183 = vunpack.c.l.b16 %v110
    %v184 = vunpack.c.h.b16 %v110
    %v185 = vunpack.c.l.b16 %v111
    %v186 = vunpack.c.h.b16 %v111
    %v187 = vunpack.c.l.b16 %v112
    %v188 = vunpack.c.h.b16 %v112
    %v189 = vunpack.c.l.b16 %v113
    %v190 = vunpack.c.h.b16 %v113
    %v191 = vunpack.c.l.b16 %v114
    %v192 = vunpack.c.h.b16 %v114
    %v193 = vunpack.c.l.b16 %v115
    %v194 = vunpack.c.h.b16 %v115
    %v195 = vunpack.c.l.b16 %v116
    %v196 = vunpack.c.h.b16 %v116
    %v197 = vunpack.c.l.b16 %v117
    %v198 = vunpack.c.h.b16 %v117
    %v199 = vunpack.c.l.b16 %v118
    %v200 = vunpack.c.h.b16 %v118
    %v201 = vunpack.c.l.b16 %v119
    %v202 = vunpack.c.h.b16 %v119
    %v203 = vunpack.c.l.b16 %v120
    %v204 = vunpack.c.h.b16 %v120
    %v205 = vunpack.c.l.b16 %v121
    %v206 = vunpack.c.h.b16 %v121
    %v207 = vunpack.c.l.b16 %v122
    %v208 = vunpack.c.h.b16 %v122
    %v209 = vunpack.c.l.b16 %v123
    %v210 = vunpack.c.h.b16 %v123
    %v211 = vunpack.c.l.b16 %v124
    %v212 = vunpack.c.h.b16 %v124
    %v213 = vunpack.c.l.b16 %v125
    %v214 = vunpack.c.h.b16 %v125
    %v215 = vunpack.c.l.b16 %v126
    %v216 = vunpack.c.h.b16 %v126
    %v217 = vunpack.c.l.b16 %v127
    %v218 = vunpack.c.h.b16 %v127
    %v219 = vunpack.c.l.b16 %v128
    %v220 = vunpack.c.h.b16 %v128
    %v221 = vunpack.c.l.b16 %v129
    %v222 = vunpack.c.h.b16 %v129
    %v223 = vunpack.c.l.b16 %v130
    %v224 = vunpack.c.h.b16 %v130
    %v225 = vunpack.c.l.b16 %v131
    %v226 = vunpack.c.h.b16 %v131
    %v227 = vunpack.c.l.b16 %v132
    %v228 = vunpack.c.h.b16 %v132
    %v229 = vunpack.c.l.b16 %v133
    %v230 = vunpack.c.h.b16 %v133
    %v231 = vunpack.c.l.b16 %v134
    %v232 = vunpack.c.h.b16 %v134
    %v233 = vunpack.c.l.b16 %v135
    %v234 = vunpack.c.h.b16 %v135
    %v235 = vunpack.c.l.b16 %v136
    %v236 = vunpack.c.h.b16 %v136
    %v237 = vunpack.c.l.b16 %v137
    %v238 = vunpack.c.h.b16 %v137
    %v239 = vunpack.c.l.b16 %v138
    %v240 = vunpack.c.h.b16 %v138
    %v241 = vunpack.c.l.b16 %v139
    %v242 = vunpack.c.h.b16 %v139
    %v243 = vpack.c.b16 %v181, %v179
    %v244 = vpack.c.b16 %v182, %v180
    %v245 = vpack.c.b16 %v185, %v183
    %v246 = vpack.c.b16 %v186, %v184
    %v247 = vpack.c.b16 %v189, %v187
    %v248 = vpack.c.b16 %v190, %v188
    %v249 = vpack.c.b16 %v193, %v191
    %v250 = vpack.c.b16 %v194, %v192
    %v251 = vpack.c.b16 %v197, %v195
    %v252 = vpack.c.b16 %v198, %v196
    %v253 = vpack.c.b16 %v201, %v199
    %v254 = vpack.c.b16 %v202, %v200
    %v255 = vpack.c.b16 %v205, %v203
    %v256 = vpack.c.b16 %v206, %v204
    %v257 = vpack.c.b16 %v209, %v207
    %v258 = vpack.c.b16 %v210, %v208
    %v259 = vpack.c.b16 %v213, %v211
    %v260 = vpack.c.b16 %v214, %v212
    %v261 = vpack.c.b16 %v217, %v215
    %v262 = vpack.c.b16 %v218, %v216
    %v263 = vpack.c.b16 %v221, %v219
    %v264 = vpack.c.b16 %v222, %v220
    %v265 = vpack.c.b16 %v225, %v223
    %v266 = vpack.c.b16 %v226, %v224
    %v267 = vpack.c.b16 %v229, %v227
    %v268 = vpack.c.b16 %v230, %v228
    %v269 = vpack.c.b16 %v233, %v231
    %v270 = vpack.c.b16 %v234, %v232
    %v271 = vpack.c.b16 %v237, %v235
    %v272 = vpack.c.b16 %v238, %v236
    %v273 = vpack.c.b16 %v241, %v239
    %v274 = vpack.c.b16 %v242, %v240
    %307 = vmatpush.bf16.msra.mxu0 %v257
    %308 = vmatpush.bf16.msra.mxu0 %v255
    %309 = vmatpush.bf16.msra.mxu0 %v253
    %310 = vmatpush.bf16.msra.mxu0 %v251
    %311 = vmatpush.bf16.msra.mxu0 %v249
    %312 = vmatpush.bf16.msra.mxu0 %v247
    %313 = vmatpush.bf16.msra.mxu0 %v245
    %314 = vmatpush.bf16.msra.mxu0 %v243
    %315 = vmatmul.bf16.gmra.mxu0 %v106
    %v316 = vpop.f32.mrf.mxu0
    %v317 = vadd.f32 %v143, %v316
    %v318 = vpop.f32.mrf.mxu0
    %319 = vdwg.mxu0
    %320 = vmatpush.bf16.msra.mxu0 %v273
    %321 = vmatpush.bf16.msra.mxu0 %v271
    %322 = vmatpush.bf16.msra.mxu0 %v269
    %323 = vmatpush.bf16.msra.mxu0 %v267
    %324 = vmatpush.bf16.msra.mxu0 %v265
    %325 = vmatpush.bf16.msra.mxu0 %v263
    %326 = vmatpush.bf16.msra.mxu0 %v261
    %327 = vmatpush.bf16.msra.mxu0 %v259
    %328 = vmatmul.bf16.gmra.mxu0 %v107
    %v329 = vpop.f32.mrf.mxu0
    %v330 = vadd.f32 %v317, %v329
    %v331 = vpop.f32.mrf.mxu0
    %332 = vdwg.mxu0
    %333 = vmatpush.bf16.msra.mxu0 %v258
    %334 = vmatpush.bf16.msra.mxu0 %v256
    %335 = vmatpush.bf16.msra.mxu0 %v254
    %336 = vmatpush.bf16.msra.mxu0 %v252
    %337 = vmatpush.bf16.msra.mxu0 %v250
    %338 = vmatpush.bf16.msra.mxu0 %v248
    %339 = vmatpush.bf16.msra.mxu0 %v246
    %340 = vmatpush.bf16.msra.mxu0 %v244
    %341 = vmatmul.bf16.gmra.mxu0 %v106
    %v342 = vpop.f32.mrf.mxu0
    %v343 = vadd.f32 %v144, %v342
    %v344 = vpop.f32.mrf.mxu0
    %345 = vdwg.mxu0
    %346 = vmatpush.bf16.msra.mxu0 %v274
    %347 = vmatpush.bf16.msra.mxu0 %v272
    %348 = vmatpush.bf16.msra.mxu0 %v270
    %349 = vmatpush.bf16.msra.mxu0 %v268
    %350 = vmatpush.bf16.msra.mxu0 %v266
    %351 = vmatpush.bf16.msra.mxu0 %v264
    %352 = vmatpush.bf16.msra.mxu0 %v262
    %353 = vmatpush.bf16.msra.mxu0 %v260
    %354 = vmatmul.bf16.gmra.mxu0 %v107
    %v355 = vpop.f32.mrf.mxu0
    %v356 = vadd.f32 %v343, %v355
    %v357 = vpop.f32.mrf.mxu0
    %358 = vdwg.mxu0
    %v359 = vmax.f32 %v330, 0.0
    %v360 = vmax.f32 %v356, 0.0
    %v361 = vpack.c.bf16 %v359, %v359
    %v362 = vpack.c.bf16 %v360, %v360
    %v363 = vld [vmem:[%s3] sm:$0xf]
    %v364 = vld [vmem:[%s3 + $0x4] sm:$0xf]
    %v365 = vld [vmem:[%s3 + $0x8] sm:$0xf]
    %v366 = vld [vmem:[%s3 + $0xc] sm:$0xf]
    %v367 = vld [vmem:[%s3 + $0x10] sm:$0xf]
    %v368 = vld [vmem:[%s3 + $0x14] sm:$0xf]
    %v369 = vld [vmem:[%s3 + $0x18] sm:$0xf]
    %v370 = vld [vmem:[%s3 + $0x1c] sm:$0xf]
    %v371 = vld [vmem:[%s3 + $0x20] sm:$0xf]
    %v372 = vld [vmem:[%s3 + $0x24] sm:$0xf]
    %v373 = vld [vmem:[%s3 + $0x28] sm:$0xf]
    %v374 = vld [vmem:[%s3 + $0x2c] sm:$0xf]
    %v375 = vld [vmem:[%s3 + $0x30] sm:$0xf]
    %v376 = vld [vmem:[%s3 + $0x34] sm:$0xf]
    %v377 = vld [vmem:[%s3 + $0x38] sm:$0xf]
    %v378 = vld [vmem:[%s3 + $0x3c] sm:$0xf]
    %v379 = vld [vmem:[%s3 + $0x40] sm:$0xf]
    %v380 = vld [vmem:[%s3 + $0x44] sm:$0xf]
    %v381 = vld [vmem:[%s3 + $0x48] sm:$0xf]
    %v382 = vld [vmem:[%s3 + $0x4c] sm:$0xf]
    %v383 = vld [vmem:[%s3 + $0x50] sm:$0xf]
    %v384 = vld [vmem:[%s3 + $0x54] sm:$0xf]
    %v385 = vld [vmem:[%s3 + $0x58] sm:$0xf]
    %v386 = vld [vmem:[%s3 + $0x5c] sm:$0xf]
    %v387 = vld [vmem:[%s3 + $0x60] sm:$0xf]
    %v388 = vld [vmem:[%s3 + $0x64] sm:$0xf]
    %v389 = vld [vmem:[%s3 + $0x68] sm:$0xf]
    %v390 = vld [vmem:[%s3 + $0x6c] sm:$0xf]
    %v391 = vld [vmem:[%s3 + $0x70] sm:$0xf]
    %v392 = vld [vmem:[%s3 + $0x74] sm:$0xf]
    %v393 = vld [vmem:[%s3 + $0x78] sm:$0xf]
    %v394 = vld [vmem:[%s3 + $0x7c] sm:$0xf]
    %v395 = vld [vmem:[%s5] sm:$0x1]
    %v396 = vperm.slane %v395, 0
    %v429 = vunpack.c.l.b16 %v363
    %v430 = vunpack.c.l.b16 %v364
    %v431 = vunpack.c.l.b16 %v365
    %v432 = vunpack.c.l.b16 %v366
    %v433 = vunpack.c.l.b16 %v367
    %v434 = vunpack.c.l.b16 %v368
    %v435 = vunpack.c.l.b16 %v369
    %v436 = vunpack.c.l.b16 %v370
    %v437 = vunpack.c.l.b16 %v371
    %v438 = vunpack.c.l.b16 %v372
    %v439 = vunpack.c.l.b16 %v373
    %v440 = vunpack.c.l.b16 %v374
    %v441 = vunpack.c.l.b16 %v375
    %v442 = vunpack.c.l.b16 %v376
    %v443 = vunpack.c.l.b16 %v377
    %v444 = vunpack.c.l.b16 %v378
    %v445 = vunpack.c.l.b16 %v379
    %v446 = vunpack.c.l.b16 %v380
    %v447 = vunpack.c.l.b16 %v381
    %v448 = vunpack.c.l.b16 %v382
    %v449 = vunpack.c.l.b16 %v383
    %v450 = vunpack.c.l.b16 %v384
    %v451 = vunpack.c.l.b16 %v385
    %v452 = vunpack.c.l.b16 %v386
    %v453 = vunpack.c.l.b16 %v387
    %v454 = vunpack.c.l.b16 %v388
    %v455 = vunpack.c.l.b16 %v389
    %v456 = vunpack.c.l.b16 %v390
    %v457 = vunpack.c.l.b16 %v391
    %v458 = vunpack.c.l.b16 %v392
    %v459 = vunpack.c.l.b16 %v393
    %v460 = vunpack.c.l.b16 %v394
    %v461 = vpack.c.b16 %v430, %v429
    %v462 = vpack.c.b16 %v432, %v431
    %v463 = vpack.c.b16 %v434, %v433
    %v464 = vpack.c.b16 %v436, %v435
    %v465 = vpack.c.b16 %v438, %v437
    %v466 = vpack.c.b16 %v440, %v439
    %v467 = vpack.c.b16 %v442, %v441
    %v468 = vpack.c.b16 %v444, %v443
    %v469 = vpack.c.b16 %v446, %v445
    %v470 = vpack.c.b16 %v448, %v447
    %v471 = vpack.c.b16 %v450, %v449
    %v472 = vpack.c.b16 %v452, %v451
    %v473 = vpack.c.b16 %v454, %v453
    %v474 = vpack.c.b16 %v456, %v455
    %v475 = vpack.c.b16 %v458, %v457
    %v476 = vpack.c.b16 %v460, %v459
    %493 = vmatpush.bf16.msra.mxu0 %v468
    %494 = vmatpush.bf16.msra.mxu0 %v467
    %495 = vmatpush.bf16.msra.mxu0 %v466
    %496 = vmatpush.bf16.msra.mxu0 %v465
    %497 = vmatpush.bf16.msra.mxu0 %v464
    %498 = vmatpush.bf16.msra.mxu0 %v463
    %499 = vmatpush.bf16.msra.mxu0 %v462
    %500 = vmatpush.bf16.msra.mxu0 %v461
    %501 = vmatmul.bf16.gmra.mxu0 %v361
    %v502 = vpop.f32.mrf.mxu0
    %v503 = vadd.f32 %v396, %v502
    %v504 = vpop.f32.mrf.mxu0
    %505 = vdwg.mxu0
    %506 = vmatpush.bf16.msra.mxu0 %v476
    %507 = vmatpush.bf16.msra.mxu0 %v475
    %508 = vmatpush.bf16.msra.mxu0 %v474
    %509 = vmatpush.bf16.msra.mxu0 %v473
    %510 = vmatpush.bf16.msra.mxu0 %v472
    %511 = vmatpush.bf16.msra.mxu0 %v471
    %512 = vmatpush.bf16.msra.mxu0 %v470
    %513 = vmatpush.bf16.msra.mxu0 %v469
    %514 = vmatmul.bf16.gmra.mxu0 %v362
    %v515 = vpop.f32.mrf.mxu0
    %v516 = vadd.f32 %v503, %v515
    %v517 = vpop.f32.mrf.mxu0
    %518 = vdwg.mxu0
    %v519 = vtanh.pop %v516
    %v520 = vld [vmem:[%s5 + $0x1] sm:$0x1]
    %v521 = vperm.slane %v520, 0
    %v522 = vmul.f32 %v519, %v521
    %v523 = vld [vmem:[%s5 + $0x2] sm:$0x1]
    %v524 = vperm.slane %v523, 0
    %v525 = vadd.f32 %v522, %v524
    %vm526 = vcmask 48128
    %527 = vst.msk [vmem:[#allocation5] sm:$0xff] %vm526, %v525
    // Predicated region
    $region30: #{tpu_custom_call.1} parent=1 // pred_check
      _
    $region31: #{tpu_custom_call.1} parent=1 // pred_check_branch
      %529 = sbr.rel (0) target = $region33
    $region32: #{tpu_custom_call.1} parent=1 // pred_region
      %531 = vsyncadd [#allocation4], 0
      %s533 = sshll.u32 [#allocation5], 4
      %s534 = int_to_ptr.vmem [resolvable:$true] %s533
      %s535 = sshll.u32 %s6, 4
      %s536 = int_to_ptr.hbm [resolvable:$true] %s535
      %538 = dma.vmem_to_hbm [thread:$0]  %s534, 128, %s536, [#allocation4]
    $region33: #{tpu_custom_call.1} parent=1 // pred_fallthru
      _
    // Predicated region
    $region34: #{tpu_custom_call.1} parent=1 // pred_check
      _
    $region35: #{tpu_custom_call.1} parent=1 // pred_check_branch
      %540 = sbr.rel (0) target = $region37
    $region36: #{tpu_custom_call.1} parent=1 // pred_region
      %542 = dma.done [#allocation4], 128
    $region37: #{tpu_custom_call.1} parent=1 // pred_fallthru
      _
    %543 = vsyncpa [#allocation3], 1
    %544 = vsyncpa [#allocation4], 1

</llo_original>
